<compile_context>
chip_gen: v6e
topology: v6e:2x2x1
jax: 0.10.0
libtpu: 0.0.40
codegen_flags: <defaults>
</compile_context>

<pallas_src>
import functools

import jax
import jax.numpy as jnp
from jax import lax
from jax.experimental import pallas as pl
from jax.experimental.pallas import tpu as pltpu

_LANES = 128
_SUBLANES = 8
_CHUNK_ROWS = 512                 # rows per in-kernel accumulation chunk
_TARGET_BLOCK_BYTES = 8 << 20     # HBM streaming block per input (native dtype)


def _cdiv(a, b):
    return -(-a // b)


def _round_up(a, b):
    return _cdiv(a, b) * b


def _dice_kernel(p_ref, t_ref, o_ref, inter_acc, union_acc, *,
                 smooth, p_exp, valid_rows, tr, chunk, ragged):
    r = pl.program_id(1)
    last = pl.num_programs(1) - 1

    @pl.when(r == 0)
    def _():
        inter_acc[...] = jnp.zeros_like(inter_acc)
        union_acc[...] = jnp.zeros_like(union_acc)

    def accum(base, size, row_limit):
        # base: row offset within the block (static or traced); size: static
        # row count (multiple of 8); row_limit: None (all rows valid) or a
        # traced scalar = number of valid rows in this block.
        p = p_ref[0, pl.ds(base, size), :].astype(jnp.float32)
        t = t_ref[0, pl.ds(base, size), :].astype(jnp.float32)
        if row_limit is not None:
            iota = lax.broadcasted_iota(jnp.int32, (size, _LANES), 0)
            mask = (base + iota) < row_limit
            # select (NOT multiply-by-mask): the padded region of a ragged
            # block is unspecified and may contain NaN/Inf.
            p = jnp.where(mask, p, 0.0)
            t = jnp.where(mask, t, 0.0)
        prod = p * t
        if p_exp == 2:
            sq = p * p + t * t            # pure VPU; never a pow (EUP) path
        else:
            sq = lax.integer_pow(p, p_exp) + lax.integer_pow(t, p_exp)
        # Fold sublane-row groups into the (8,128) accumulators with pure
        # elementwise adds (no per-chunk cross-lane reduction).
        inter_acc[...] += prod.reshape(size // _SUBLANES, _SUBLANES, _LANES).sum(axis=0)
        union_acc[...] += sq.reshape(size // _SUBLANES, _SUBLANES, _LANES).sum(axis=0)

    n_full = tr // chunk
    rem = tr % chunk

    def run_block(row_limit):
        if n_full == 1:
            accum(0, chunk, row_limit)
        elif n_full > 1:
            def body(c, carry):
                accum(pl.multiple_of(c * chunk, chunk), chunk, row_limit)
                return carry
            lax.fori_loop(0, n_full, body, 0)
        if rem:
            accum(n_full * chunk, rem, row_limit)

    if ragged:
        @pl.when(r < last)
        def _():
            run_block(None)

        @pl.when(r == last)
        def _():
            run_block(valid_rows - r * tr)
    else:
        run_block(None)

    @pl.when(r == last)
    def _():
        inter = jnp.sum(inter_acc[...]) + smooth
        union = jnp.sum(union_acc[...]) + smooth
        o_ref[...] = (1.0 - inter / union).reshape(1, 1, 1)


@functools.partial(jax.jit, static_argnames=("smooth", "p_exp", "reduction",
                                             "block_bytes"))
def dice_loss(predict, target, smooth=1e-4, p_exp=2, reduction="mean",
              block_bytes=_TARGET_BLOCK_BYTES):
    if p_exp < 1:
        raise ValueError("p_exp must be >= 1 (zero padding would corrupt union)")
    B = predict.shape[0]
    p2 = predict.reshape(B, -1)        # torch: .view(B, -1)
    t2 = target.reshape(B, -1)
    N = p2.shape[1]
    itemsize = jnp.dtype(predict.dtype).itemsize

    # Minimal alignment pad only: lane-dense last dim (128), rows multiple of
    # 8.  Skipped entirely when already aligned; zeros contribute exactly 0 to
    # both inter and union for p_exp >= 1.
    rows = _cdiv(N, _LANES)
    rows8 = _round_up(rows, _SUBLANES)
    n_aligned = rows8 * _LANES
    if n_aligned != N:
        p2 = jnp.pad(p2, ((0, 0), (0, n_aligned - N)))
        t2 = jnp.pad(t2, ((0, 0), (0, n_aligned - N)))
    p3 = p2.reshape(B, rows8, _LANES)
    t3 = t2.reshape(B, rows8, _LANES)

    # Row-block size: ~block_bytes per input, multiple of 8, never larger than
    # the array; the final (possibly ragged) block over-reads at most 8 rows.
    tr_target = max(_SUBLANES,
                    (block_bytes // (_LANES * itemsize)) // _SUBLANES * _SUBLANES)
    nblk = _cdiv(rows8, tr_target)
    tr = min(_round_up(_cdiv(rows8, nblk), _SUBLANES), rows8)
    grid_r = _cdiv(rows8, tr)
    ragged = (rows8 % tr) != 0
    chunk = min(_CHUNK_ROWS, tr)

    # VMEM: 2 inputs x 2 pipeline buffers x block (native dtype) + bounded f32
    # chunk working set + accumulators + headroom; well under v7x's 64 MiB.
    block_vmem = tr * _LANES * itemsize
    chunk_vmem = chunk * _LANES * 4
    vmem_limit = int(min(max(4 * block_vmem + 10 * chunk_vmem + (2 << 20),
                             16 << 20), 56 << 20))

    kernel = functools.partial(
        _dice_kernel, smooth=float(smooth), p_exp=int(p_exp),
        valid_rows=rows8, tr=tr, chunk=chunk, ragged=ragged)

    cost = pl.CostEstimate(
        flops=5 * B * n_aligned,
        transcendentals=0,
        bytes_accessed=2 * B * n_aligned * itemsize + 4 * B)

    per_batch = pl.pallas_call(
        kernel,
        out_shape=jax.ShapeDtypeStruct((B, 1, 1), jnp.float32),
        grid_spec=pltpu.PrefetchScalarGridSpec(
            num_scalar_prefetch=0,
            grid=(B, grid_r),
            in_specs=[
                pl.BlockSpec((1, tr, _LANES), lambda b, r: (b, r, 0)),
                pl.BlockSpec((1, tr, _LANES), lambda b, r: (b, r, 0)),
            ],
            out_specs=pl.BlockSpec((1, 1, 1), lambda b, r: (b, 0, 0)),
            scratch_shapes=[
                pltpu.VMEM((_SUBLANES, _LANES), jnp.float32),  # inter acc
                pltpu.VMEM((_SUBLANES, _LANES), jnp.float32),  # union acc
            ],
        ),
        compiler_params=pltpu.CompilerParams(
            dimension_semantics=("parallel", "arbitrary"),
            vmem_limit_bytes=vmem_limit,
        ),
        cost_estimate=cost,
    )(p3, t3)

    loss = per_batch[:, 0, 0]
    if reduction == "mean":
        return jnp.mean(loss)
    elif reduction == "sum":
        return jnp.sum(loss)
    elif reduction == "none":
        return loss
    else:
        raise ValueError(f"Unexpected reduction {reduction}")


def _dice_ref(predict, target, smooth=1e-4, p_exp=2):
    B = predict.shape[0]
    p2 = predict.reshape(B, -1).astype(jnp.float32)
    t2 = target.reshape(B, -1).astype(jnp.float32)
    inter = jnp.sum(p2 * t2, axis=1) + smooth
    union = jnp.sum(p2 ** p_exp + t2 ** p_exp, axis=1) + smooth
    return jnp.mean(1.0 - inter / union)


if __name__ == "__main__":
    key = jax.random.PRNGKey(0)
    k1, k2, k3, k4 = jax.random.split(key, 4)

    # Primary small test: NCHW, as the PyTorch module would receive.
    predict = jax.nn.sigmoid(jax.random.normal(k1, (2, 4, 16, 16), jnp.float32))
    target = (jax.random.uniform(k2, (2, 4, 16, 16)) > 0.5).astype(jnp.float32)
    loss = dice_loss(predict, target)
    jax.block_until_ready(loss)
    ref = _dice_ref(predict, target)
    assert jnp.allclose(loss, ref, rtol=1e-5, atol=1e-6), (loss, ref)

    # Secondary tests (small block_bytes override so the large-input code
    # paths trigger at a modest shape): lane-alignment pad, in-kernel chunk
    # fori_loop + static tail, ragged-last-block masking, bf16 streaming.
    p_big = jax.nn.sigmoid(jax.random.normal(k3, (2, 1, 512, 301), jnp.float32))
    t_big = (jax.random.uniform(k4, (2, 1, 512, 301)) > 0.5).astype(jnp.float32)

    l1 = dice_loss(p_big, t_big, block_bytes=1 << 20)          # fori + tail
    l2 = dice_loss(p_big.astype(jnp.bfloat16),                 # ragged + mask
                   t_big.astype(jnp.bfloat16), block_bytes=256 << 10)
    jax.block_until_ready((l1, l2))
    r1 = _dice_ref(p_big, t_big)
    r2 = _dice_ref(p_big.astype(jnp.bfloat16), t_big.astype(jnp.bfloat16))
    assert jnp.allclose(l1, r1, rtol=1e-4, atol=1e-5), (l1, r1)
    assert jnp.allclose(l2, r2, rtol=1e-4, atol=1e-5), (l2, r2)

    print("KERNEL_OK")
</pallas_src>

<mosaic_0001>
module attributes {stable_mosaic.version = 11 : i64} {
  func.func @_dice_kernel(%arg0: i32, %arg1: i32, %arg2: memref<1x8x128xf32, #tpu.memory_space<vmem>>, %arg3: memref<1x8x128xf32, #tpu.memory_space<vmem>>, %arg4: memref<1x1x1xf32, #tpu.memory_space<vmem>>, %arg5: memref<8x128xf32, #tpu.memory_space<vmem>>, %arg6: memref<8x128xf32, #tpu.memory_space<vmem>>) attributes {dimension_semantics = [#tpu.dimension_semantics<parallel>, #tpu.dimension_semantics<arbitrary>], iteration_bounds = array<i64: 2, 1>, scalar_prefetch = 0 : i64, scratch_operands = 2 : i64, tpu.core_type = #tpu.core_type<tc>, window_params = [{transform_indices = @transform_0, window_bounds = array<i64: 1, 8, 128>}, {transform_indices = @transform_1, window_bounds = array<i64: 1, 8, 128>}, {transform_indices = @transform_2, window_bounds = array<i64: 1, 1, 1>}]} {
    %c0_i32 = arith.constant 0 : i32
    %0 = arith.cmpi eq, %arg1, %c0_i32 : i32
    %1 = arith.extui %0 : i1 to i32
    %c0_i32_0 = arith.constant 0 : i32
    %2 = arith.cmpi ne, %1, %c0_i32_0 : i32
    scf.if %2 {
      %cst_17 = arith.constant 0.000000e+00 : f32
      %24 = vector.broadcast %cst_17 : f32 to vector<8x128xf32>
      %c0_18 = arith.constant 0 : index
      %c0_19 = arith.constant 0 : index
      %25 = vector.load %arg5[%c0_18, %c0_19] : memref<8x128xf32, #tpu.memory_space<vmem>>, vector<8x128xf32>
      tpu.vector_store %arg5[%c0_18, %c0_19], %24 {strides = array<i32>} : memref<8x128xf32, #tpu.memory_space<vmem>>, vector<8x128xf32>,
      %cst_20 = arith.constant 0.000000e+00 : f32
      %26 = vector.broadcast %cst_20 : f32 to vector<8x128xf32>
      %c0_21 = arith.constant 0 : index
      %c0_22 = arith.constant 0 : index
      %27 = vector.load %arg6[%c0_21, %c0_22] : memref<8x128xf32, #tpu.memory_space<vmem>>, vector<8x128xf32>
      tpu.vector_store %arg6[%c0_21, %c0_22], %26 {strides = array<i32>} : memref<8x128xf32, #tpu.memory_space<vmem>>, vector<8x128xf32>,
    } else {
    }
    %c0 = arith.constant 0 : index
    %c0_1 = arith.constant 0 : index
    %c0_2 = arith.constant 0 : index
    %3 = vector.load %arg2[%c0, %c0_1, %c0_2] : memref<1x8x128xf32, #tpu.memory_space<vmem>>, vector<1x8x128xf32>
    %4 = vector.shape_cast %3 : vector<1x8x128xf32> to vector<8x128xf32>
    %c0_3 = arith.constant 0 : index
    %c0_4 = arith.constant 0 : index
    %c0_5 = arith.constant 0 : index
    %5 = vector.load %arg3[%c0_3, %c0_4, %c0_5] : memref<1x8x128xf32, #tpu.memory_space<vmem>>, vector<1x8x128xf32>
    %6 = vector.shape_cast %5 : vector<1x8x128xf32> to vector<8x128xf32>
    %7 = arith.mulf %4, %6 : vector<8x128xf32>
    %8 = arith.mulf %4, %4 : vector<8x128xf32>
    %9 = arith.mulf %6, %6 : vector<8x128xf32>
    %10 = arith.addf %8, %9 : vector<8x128xf32>
    %c0_6 = arith.constant 0 : index
    %c0_7 = arith.constant 0 : index
    %11 = vector.load %arg5[%c0_6, %c0_7] : memref<8x128xf32, #tpu.memory_space<vmem>>, vector<8x128xf32>
    %12 = vector.shape_cast %7 : vector<8x128xf32> to vector<1x8x128xf32>
    %cst = arith.constant dense<0.000000e+00> : vector<8x128xf32>
    %13 = vector.multi_reduction <add>, %12, %cst [0] : vector<1x8x128xf32> to vector<8x128xf32>
    %14 = arith.addf %11, %13 : vector<8x128xf32>
    %c0_8 = arith.constant 0 : index
    %c0_9 = arith.constant 0 : index
    %15 = vector.load %arg5[%c0_8, %c0_9] : memref<8x128xf32, #tpu.memory_space<vmem>>, vector<8x128xf32>
    tpu.vector_store %arg5[%c0_8, %c0_9], %14 {strides = array<i32>} : memref<8x128xf32, #tpu.memory_space<vmem>>, vector<8x128xf32>,
    %c0_10 = arith.constant 0 : index
    %c0_11 = arith.constant 0 : index
    %16 = vector.load %arg6[%c0_10, %c0_11] : memref<8x128xf32, #tpu.memory_space<vmem>>, vector<8x128xf32>
    %17 = vector.shape_cast %10 : vector<8x128xf32> to vector<1x8x128xf32>
    %cst_12 = arith.constant dense<0.000000e+00> : vector<8x128xf32>
    %18 = vector.multi_reduction <add>, %17, %cst_12 [0] : vector<1x8x128xf32> to vector<8x128xf32>
    %19 = arith.addf %16, %18 : vector<8x128xf32>
    %c0_13 = arith.constant 0 : index
    %c0_14 = arith.constant 0 : index
    %20 = vector.load %arg6[%c0_13, %c0_14] : memref<8x128xf32, #tpu.memory_space<vmem>>, vector<8x128xf32>
    tpu.vector_store %arg6[%c0_13, %c0_14], %19 {strides = array<i32>} : memref<8x128xf32, #tpu.memory_space<vmem>>, vector<8x128xf32>,
    %c0_i32_15 = arith.constant 0 : i32
    %21 = arith.cmpi eq, %arg1, %c0_i32_15 : i32
    %22 = arith.extui %21 : i1 to i32
    %c0_i32_16 = arith.constant 0 : i32
    %23 = arith.cmpi ne, %22, %c0_i32_16 : i32
    scf.if %23 {
      %c0_17 = arith.constant 0 : index
      %c0_18 = arith.constant 0 : index
      %24 = vector.load %arg5[%c0_17, %c0_18] : memref<8x128xf32, #tpu.memory_space<vmem>>, vector<8x128xf32>
      %25 = vector.shape_cast %24 : vector<8x128xf32> to vector<1x8x128xf32>
      %cst_19 = arith.constant dense<0.000000e+00> : vector<1xf32>
      %26 = vector.multi_reduction <add>, %25, %cst_19 [1, 2] : vector<1x8x128xf32> to vector<1xf32>
      %27 = vector.shape_cast %26 : vector<1xf32> to vector<1x1x1xf32>
      %28 = vector.extract %27[0, 0, 0] : f32 from vector<1x1x1xf32>
      %cst_20 = arith.constant 9.99999974E-5 : f32
      %29 = arith.addf %28, %cst_20 : f32
      %c0_21 = arith.constant 0 : index
      %c0_22 = arith.constant 0 : index
      %30 = vector.load %arg6[%c0_21, %c0_22] : memref<8x128xf32, #tpu.memory_space<vmem>>, vector<8x128xf32>
      %31 = vector.shape_cast %30 : vector<8x128xf32> to vector<1x8x128xf32>
      %cst_23 = arith.constant dense<0.000000e+00> : vector<1xf32>
      %32 = vector.multi_reduction <add>, %31, %cst_23 [1, 2] : vector<1x8x128xf32> to vector<1xf32>
      %33 = vector.shape_cast %32 : vector<1xf32> to vector<1x1x1xf32>
      %34 = vector.extract %33[0, 0, 0] : f32 from vector<1x1x1xf32>
      %cst_24 = arith.constant 9.99999974E-5 : f32
      %35 = arith.addf %34, %cst_24 : f32
      %36 = arith.divf %29, %35 : f32
      %cst_25 = arith.constant 1.000000e+00 : f32
      %37 = arith.subf %cst_25, %36 : f32
      %38 = vector.broadcast %37 : f32 to vector<1x1x1xf32>
      %c0_26 = arith.constant 0 : index
      %c0_27 = arith.constant 0 : index
      %c0_28 = arith.constant 0 : index
      %39 = vector.load %arg4[%c0_26, %c0_27, %c0_28] : memref<1x1x1xf32, #tpu.memory_space<vmem>>, vector<1x1x1xf32>
      tpu.vector_store %arg4[%c0_26, %c0_27, %c0_28], %38 {strides = array<i32>} : memref<1x1x1xf32, #tpu.memory_space<vmem>>, vector<1x1x1xf32>,
    } else {
    }
    return
  }
  func.func @transform_0(%arg0: i32, %arg1: i32) -> (i32, i32, i32) {
    %c0_i32 = arith.constant 0 : i32
    %c0_i32_0 = arith.constant 0 : i32
    return %arg0, %arg1, %c0_i32 : i32, i32, i32
  }
  func.func @transform_1(%arg0: i32, %arg1: i32) -> (i32, i32, i32) {
    %c0_i32 = arith.constant 0 : i32
    %c0_i32_0 = arith.constant 0 : i32
    return %arg0, %arg1, %c0_i32 : i32, i32, i32
  }
  func.func @transform_2(%arg0: i32, %arg1: i32) -> (i32, i32, i32) {
    %c0_i32 = arith.constant 0 : i32
    %c0_i32_0 = arith.constant 0 : i32
    %c0_i32_1 = arith.constant 0 : i32
    return %arg0, %c0_i32, %c0_i32_0 : i32, i32, i32
  }
}

</mosaic_0001>

<llo_original>
// kernel: dice_loss.1
$region0: #{dice_loss.1}
  #allocation0 [shape = 'u32[]', space=smem, size = 0x4, offset = 0x4, fixed_abs, tag = 'smem constant byte address 0x4 - core index']
  #allocation1 [shape = 'u32[144,128]{1,0:T(1,128)}', space=vmem, size = 0x12000, scoped, tag = 'internal scratch']
  #allocation2 [shape = 'f32[8,128]{1,0:T(8,128)}', space=vmem, size = 0x1000, scoped, tag = 'scratch operand']
  #allocation3 [shape = 'f32[8,128]{1,0:T(8,128)}', space=vmem, size = 0x1000, scoped, tag = 'scratch operand']
  %s0 = inlined_call_operand.vmem [shape: f32[2,8,128], index: 0, kind: input, shape index: {}]
  %s1 = inlined_call_operand.vmem [shape: f32[2,8,128], index: 1, kind: input, shape index: {}]
  %s2 = inlined_call_operand.vmem [shape: f32[2,1,1], index: 2, kind: output, shape index: {}]
  %s3 = sld [smem:[#allocation0]]
  $region49: #{dice_loss.1} parent=0
    _
  %s5 = ssub.s32 1, %s3
  %s6 = scalar_select 0, %s5, %s3
  loop: start=0, step=1, limit=4
  $region2: #{dice_loss.1} parent=0 // loop_pre_header
    _
  $region3: #{dice_loss.1} parent=0 // loop_header
    %s8 = sphi 0, %s12
    %p9 = scmp.ge.s32.totalorder %s8, 4
    %s15 = sphi 0, %s27
    %s16 = sphi 0, %s23
    %s17 = sphi 0, %s15
    %s18 = sphi 0, %s16
    %s19 = sphi 0, %s17
    %s20 = sphi 0, %s18
    %s32 = sphi 0, %s34
    %s35 = sphi 0, %s32
    %s36 = sphi 0, %s35
    %s52 = sphi 0, %s36
    %s60 = sphi 0, %s62
    %s63 = sphi 0, %s60
    %s64 = sphi 0, %s63
    %s80 = sphi 0, %s64
    %s86 = sphi 0, %s88
    %s89 = sphi 0, %s86
    %s90 = sphi 0, %s89
    %s106 = sphi 0, %s90
  $region4: #{dice_loss.1} parent=0 // loop_header_branch
    %11 = sbr.rel (%p9) target = $region8
  $region5: #{dice_loss.1} parent=0 // loop_body
    %s13 = ssub.s32 %s8, 1
    %s14 = ssub.s32 %s8, 2
    %s21 = sadd.s32 1, %s16
    %p22 = scmp.ge.s32.totalorder %s21, 1
    %s23 = scalar_select %p22, 0, %s21
    %s24 = sadd.s32 1, %s15
    %s25 = scalar_select %p22, %s24, %s15
    %p26 = scmp.ge.s32.totalorder %s25, 2
    %s27 = scalar_select %p26, 0, %s25
    %s28 = ssub.s32 %s15, %s27
    %s29 = ssub.s32 %s16, %s23
    %s30 = sor.u32 %s28, %s29
    %p31 = scmp.eq.s32.totalorder %s30, 0
    %s33 = sadd.s32 %s32, 1
    %s34 = scalar_select %p31, %s32, %s33
    %p37 = pneg %p31
    %p38 = scmp.eq.s32.totalorder %s8, 1
    %p39 = por %p37, %p38
    %p40 = scmp.ne.s32.totalorder %s32, %s35
    %p41 = scmp.eq.s32.totalorder %s8, 0
    %p42 = por %p40, %p41
    %p43 = scmp.ne.s32.totalorder %s32, %s35
    %p44 = scmp.eq.s32.totalorder %s13, 1
    %p45 = por %p43, %p44
    %p46 = scmp.ne.s32.totalorder %s35, %s36
    %p47 = scmp.eq.s32.totalorder %s13, 0
    %p48 = por %p46, %p47
    %p49 = scmp.ne.s32.totalorder %s35, %s36
    %p50 = scmp.eq.s32.totalorder %s14, 1
    %p51 = por %p49, %p50
    %p53 = scmp.ne.s32.totalorder %s36, %s52
    %p54 = scmp.eq.s32.totalorder %s14, 0
    %p55 = por %p53, %p54
    %s56 = ssub.s32 %s15, %s27
    %s57 = ssub.s32 %s16, %s23
    %s58 = sor.u32 %s56, %s57
    %p59 = scmp.eq.s32.totalorder %s58, 0
    %s61 = sadd.s32 %s60, 1
    %s62 = scalar_select %p59, %s60, %s61
    %p65 = pneg %p59
    %p66 = scmp.eq.s32.totalorder %s8, 1
    %p67 = por %p65, %p66
    %p68 = scmp.ne.s32.totalorder %s60, %s63
    %p69 = scmp.eq.s32.totalorder %s8, 0
    %p70 = por %p68, %p69
    %p71 = scmp.ne.s32.totalorder %s60, %s63
    %p72 = scmp.eq.s32.totalorder %s13, 1
    %p73 = por %p71, %p72
    %p74 = scmp.ne.s32.totalorder %s63, %s64
    %p75 = scmp.eq.s32.totalorder %s13, 0
    %p76 = por %p74, %p75
    %p77 = scmp.ne.s32.totalorder %s63, %s64
    %p78 = scmp.eq.s32.totalorder %s14, 1
    %p79 = por %p77, %p78
    %p81 = scmp.ne.s32.totalorder %s64, %s80
    %p82 = scmp.eq.s32.totalorder %s14, 0
    %p83 = por %p81, %p82
    %s84 = ssub.s32 %s15, %s27
    %p85 = scmp.eq.s32.totalorder %s84, 0
    %s87 = sadd.s32 %s86, 1
    %s88 = scalar_select %p85, %s86, %s87
    %p91 = pneg %p85
    %p92 = scmp.eq.s32.totalorder %s8, 1
    %p93 = por %p91, %p92
    %p94 = scmp.ne.s32.totalorder %s86, %s89
    %p95 = scmp.eq.s32.totalorder %s8, 0
    %p96 = por %p94, %p95
    %p97 = scmp.ne.s32.totalorder %s86, %s89
    %p98 = scmp.eq.s32.totalorder %s13, 1
    %p99 = por %p97, %p98
    %p100 = scmp.ne.s32.totalorder %s89, %s90
    %p101 = scmp.eq.s32.totalorder %s13, 0
    %p102 = por %p100, %p101
    %p103 = scmp.ne.s32.totalorder %s89, %s90
    %p104 = scmp.eq.s32.totalorder %s14, 1
    %p105 = por %p103, %p104
    %p107 = scmp.ne.s32.totalorder %s90, %s106
    %p108 = scmp.eq.s32.totalorder %s14, 0
    %p109 = por %p107, %p108
    %p110 = scmp.le.s32.totalorder 1, %s8
    %p111 = scmp.lt.s32.totalorder %s8, 3
    %p112 = pnand %p110, %p111
    %p113 = pneg %p112
    // Predicated region
    $region9: #{dice_loss.1} parent=5 // pred_check
      _
    $region10: #{dice_loss.1} parent=5 // pred_check_branch
      %115 = sbr.rel (%p112) target = $region12
    $region11: #{dice_loss.1} parent=5 // pred_region
      %s116 = ssub.s32 %s8, 1
    $region12: #{dice_loss.1} parent=5 // pred_fallthru
      _
    %p117 = scmp.lt.s32.totalorder %s8, 2
    // Predicated region
    $region13: #{dice_loss.1} parent=5 // pred_check
      %p118 = pneg %p117
    $region14: #{dice_loss.1} parent=5 // pred_check_branch
      %120 = sbr.rel (%p118) target = $region16
    $region15: #{dice_loss.1} parent=5 // pred_region
      // Predicated region
      $region17: #{dice_loss.1} parent=15 // pred_check
        %p121 = pneg %p42
      $region18: #{dice_loss.1} parent=15 // pred_check_branch
        %123 = sbr.rel (%p121) target = $region20
      $region19: #{dice_loss.1} parent=15 // pred_region
        %p124 = scmp.lt.s32.totalorder %s15, 1
        %s125 = scalar_select %p124, %s15, 1
        %p126 = scmp.lt.s32.totalorder %s16, 0
        %s127 = scalar_select %p126, %s16, 0
        %s128 = sadd.s32 %s127, %s125
        %s129 = smul.addr %s128, 8
        %s130 = scalar_lea.vmem %s0, %s129
      $region20: #{dice_loss.1} parent=15 // pred_fallthru
        _
      // Predicated region
      $region21: #{dice_loss.1} parent=15 // pred_check
        %p131 = pneg %p70
      $region22: #{dice_loss.1} parent=15 // pred_check_branch
        %133 = sbr.rel (%p131) target = $region24
      $region23: #{dice_loss.1} parent=15 // pred_region
        %p134 = scmp.lt.s32.totalorder %s15, 1
        %s135 = scalar_select %p134, %s15, 1
        %p136 = scmp.lt.s32.totalorder %s16, 0
        %s137 = scalar_select %p136, %s16, 0
        %s138 = sadd.s32 %s137, %s135
        %s139 = smul.addr %s138, 8
        %s140 = scalar_lea.vmem %s1, %s139
      $region24: #{dice_loss.1} parent=15 // pred_fallthru
        _
    $region16: #{dice_loss.1} parent=5 // pred_fallthru
      _
    %p141 = scmp.le.s32.totalorder 1, %s8
    %p142 = scmp.lt.s32.totalorder %s8, 3
    %p143 = pnand %p141, %p142
    %p144 = pneg %p143
    // Predicated region
    $region25: #{dice_loss.1} parent=5 // pred_check
      _
    $region26: #{dice_loss.1} parent=5 // pred_check_branch
      %146 = sbr.rel (%p143) target = $region28
    $region27: #{dice_loss.1} parent=5 // pred_region
      %s147 = ssub.s32 %s8, 1
      %p148 = scmp.lt.s32.totalorder %s17, 1
      %s149 = scalar_select %p148, %s17, 1
      %p150 = scmp.lt.s32.totalorder %s18, 0
      %s151 = scalar_select %p150, %s18, 0
      %s152 = sadd.s32 %s151, %s149
      %s153 = smul.addr %s152, 8
      %s154 = scalar_lea.vmem %s0, %s153
      %p155 = pneg %p48
      %p156 = pneg %p45
      %p157 = scmp.lt.s32.totalorder %s17, 1
      %s158 = scalar_select %p157, %s17, 1
      %p159 = scmp.lt.s32.totalorder %s18, 0
      %s160 = scalar_select %p159, %s18, 0
      %s161 = sadd.s32 %s160, %s158
      %s162 = smul.addr %s161, 8
      %s163 = scalar_lea.vmem %s1, %s162
      %p164 = pneg %p76
      %p165 = pneg %p73
      %p166 = pneg %p102
      %p167 = pneg %p99
      %p168 = scmp.lt.s32.totalorder %s17, 1
      %s169 = scalar_select %p168, %s17, 1
      %s170 = scalar_lea.vmem %s2, %s169
      %p171 = scmp.lt.s32.totalorder %s17, 1
      %s172 = scalar_select %p171, %s17, 1
      %p173 = scmp.lt.s32.totalorder %s18, 0
      %s174 = scalar_select %p173, %s18, 0
      %s175 = sadd.s32 %s174, %s172
      %s176 = smul.addr %s175, 8
      %s177 = scalar_lea.vmem %s0, %s176
      %p178 = scmp.lt.s32.totalorder %s17, 1
      %s179 = scalar_select %p178, %s17, 1
      %p180 = scmp.lt.s32.totalorder %s18, 0
      %s181 = scalar_select %p180, %s18, 0
      %s182 = sadd.s32 %s181, %s179
      %s183 = smul.addr %s182, 8
      %s184 = scalar_lea.vmem %s1, %s183
      %p185 = scmp.lt.s32.totalorder %s17, 1
      %s186 = scalar_select %p185, %s17, 1
      %s187 = scalar_lea.vmem %s2, %s186
      %p188 = scmp.eq.s32.totalorder %s18, 0
      // Predicated region
      $region29: #{dice_loss.1} parent=27 // pred_check
        %p189 = pneg %p188
      $region30: #{dice_loss.1} parent=27 // pred_check_branch
        %191 = sbr.rel (%p189) target = $region32
      $region31: #{dice_loss.1} parent=27 // pred_region
        %192 = vst [vmem:[#allocation2] sm:$0xff] 0.0
        %193 = vst [vmem:[#allocation3] sm:$0xff] 0.0
      $region32: #{dice_loss.1} parent=27 // pred_fallthru
        _
      %v194 = vld [vmem:[%s177] sm:$0xff]
      %v195 = vld [vmem:[%s184] sm:$0xff]
      %v196 = vmul.f32 %v194, %v195
      %v197 = vmul.f32 %v194, %v194
      %v198 = vmul.f32 %v195, %v195
      %v199 = vadd.f32 %v197, %v198
      %v200 = vld [vmem:[#allocation2] sm:$0xff]
      %v201 = vadd.f32 %v196, 0.0
      %v202 = vadd.f32 %v200, %v201
      %203 = vst [vmem:[#allocation2] sm:$0xff] %v202
      %v204 = vld [vmem:[#allocation3] sm:$0xff]
      %v205 = vadd.f32 %v199, 0.0
      %v206 = vadd.f32 %v204, %v205
      %207 = vst [vmem:[#allocation3] sm:$0xff] %v206
      // Predicated region
      $region33: #{dice_loss.1} parent=27 // pred_check
        %p208 = pneg %p188
      $region34: #{dice_loss.1} parent=27 // pred_check_branch
        %210 = sbr.rel (%p208) target = $region36
      $region35: #{dice_loss.1} parent=27 // pred_region
        %v211 = vld [vmem:[#allocation2] sm:$0xff]
        %212 = vadd.xlane.f32.xlu0 %v211
        %v213 = vpop.xlane.xlu0 %212
        %v214 = vrot.slane %v213, 4
        %v215 = vadd.f32 %v213, %v214
        %v216 = vrot.slane %v215, 2
        %v217 = vadd.f32 %v215, %v216
        %v218 = vrot.slane %v217, 1
        %v219 = vadd.f32 %v217, %v218
        %s220 = vtos %v219
        %s221 = sadd.f32 %s220, 0.0001
        %v222 = vld [vmem:[#allocation3] sm:$0xff]
        %223 = vadd.xlane.f32.xlu0 %v222
        %v224 = vpop.xlane.xlu0 %223
        %v225 = vrot.slane %v224, 4
        %v226 = vadd.f32 %v224, %v225
        %v227 = vrot.slane %v226, 2
        %v228 = vadd.f32 %v226, %v227
        %v229 = vrot.slane %v228, 1
        %v230 = vadd.f32 %v228, %v229
        %s231 = vtos %v230
        %s232 = sadd.f32 %s231, 0.0001
        %v233 = vstv %s232
        %v234 = vrcp.pop %v233
        %s235 = vtos %v234
        %s236 = smul.f32 %s221, %s235
        %s237 = ssub.f32 1.0, %s236
        %v238 = vstv %s237
        %vm239 = vcmask 0
        %240 = vst.msk [vmem:[%s187] sm:$0x1] %vm239, %v238
      $region36: #{dice_loss.1} parent=27 // pred_fallthru
        _
      %p241 = scmp.lt.s32.totalorder %s17, 1
      %s242 = scalar_select %p241, %s17, 1
      %s243 = scalar_lea.vmem %s2, %s242
      // Predicated region
      $region37: #{dice_loss.1} parent=27 // pred_check
        %p244 = pneg %p99
      $region38: #{dice_loss.1} parent=27 // pred_check_branch
        %246 = sbr.rel (%p244) target = $region40
      $region39: #{dice_loss.1} parent=27 // pred_region
        _
      $region40: #{dice_loss.1} parent=27 // pred_fallthru
        _
    $region28: #{dice_loss.1} parent=5 // pred_fallthru
      _
    %p247 = scmp.le.s32.totalorder 2, %s8
    // Predicated region
    $region41: #{dice_loss.1} parent=5 // pred_check
      %p248 = pneg %p247
    $region42: #{dice_loss.1} parent=5 // pred_check_branch
      %250 = sbr.rel (%p248) target = $region44
    $region43: #{dice_loss.1} parent=5 // pred_region
      %s251 = ssub.s32 %s8, 2
      // Predicated region
      $region45: #{dice_loss.1} parent=43 // pred_check
        %p252 = pneg %p105
      $region46: #{dice_loss.1} parent=43 // pred_check_branch
        %254 = sbr.rel (%p252) target = $region48
      $region47: #{dice_loss.1} parent=43 // pred_region
        %p255 = scmp.lt.s32.totalorder %s19, 1
        %s256 = scalar_select %p255, %s19, 1
        %s257 = scalar_lea.vmem %s2, %s256
      $region48: #{dice_loss.1} parent=43 // pred_fallthru
        _
    $region44: #{dice_loss.1} parent=5 // pred_fallthru
      _
  $region6: #{dice_loss.1} parent=0 // loop_footer
    %s12 = sadd.s32 1, %s8
  $region7: #{dice_loss.1} parent=0 // loop_footer_branch
    %7 = sbr.rel target = $region3
  $region8: #{dice_loss.1} parent=0 // loop_exit
    _

</llo_original>
